<compile_context>
chip_gen: v6e
topology: v6e:2x2x1
jax: 0.10.0
libtpu: 0.0.40
codegen_flags: <defaults>
</compile_context>

<pallas_src>
import jax
import jax.numpy as jnp
from jax.experimental import pallas as pl
from jax.experimental.pallas import tpu as pltpu


def _linear_kernel(x_ref, w_ref, o_ref):
    # x_ref: (TM, K) rows of the flattened (B*N, K) input
    # w_ref: (K, D)  pre-transposed nn.Linear weight (natural MXU orientation)
    # o_ref: (TM, D)
    o_ref[...] = jnp.dot(
        x_ref[...], w_ref[...], preferred_element_type=jnp.float32
    ).astype(o_ref.dtype)


def concat_resnet_transform_v3(
    concat_feature: jax.Array,
    weight: jax.Array,
    *,
    tm_max: int = 8192,
    min_tiles: int = 8,
) -> jax.Array:
    """Forward of ConcatResnetTransformV3.

    concat_feature: (B, H, N, D) in the same row-major order as the PyTorch tensor.
    weight:         (D, H*D)     PyTorch nn.Linear layout (out_features, in_features).

    Returns (B, N, D) with the same dtype as `concat_feature`.
    """
    B, H, N, Do = concat_feature.shape
    D, K = weight.shape
    assert K == H * Do, "weight in_features must equal headNumb * originDim"

    # torch.reshape((B, N, -1)) equivalent with batch folded into the matmul M dim.
    # Both reshapes are row-major reinterpretations (no data movement).
    x = jnp.reshape(concat_feature, (B * N, K))
    M = B * N
    out_dtype = x.dtype

    # One-time ~16 KiB transpose (+cast) of the small weight in the wrapper.
    wt = weight.T.astype(x.dtype)                      # (K, D)

    itemsize = jnp.dtype(x.dtype).itemsize
    sub = 16 if itemsize == 2 else 8  # sublane granularity of the second-minor dim

    # ---- M-tile selection ---------------------------------------------------
    # Live VMEM: 2x double-buffered x tile + 2x double-buffered out tile +
    # 1x single-buffered weight, kept under ~24 MiB (safe on every generation).
    vmem_budget = 24 * 1024 * 1024
    row_bytes = 2 * (K + D) * itemsize
    tm_cap = max(sub, (vmem_budget - K * D * itemsize) // row_bytes)
    tm_cap = max(sub, (int(tm_cap) // sub) * sub)

    if M <= sub:
        tm = M  # tiny problem: single full-extent tile (always layout-legal)
    else:
        # Keep at least `min_tiles` grid steps so v7x megacore shards the M axis
        # across both TensorCores and the pipeline has steps to overlap, while
        # still growing the tile as large as the budget allows for big M.
        tm_split = -(-M // min_tiles)                   # cdiv(M, min_tiles)
        tm_split = ((tm_split + sub - 1) // sub) * sub  # round up to sublane multiple
        tm = min(tm_cap, tm_max, tm_split)
        tm = max(sub, (tm // sub) * sub)
        tm = min(tm, M)                                 # safety clamp (full extent)
    grid_m = pl.cdiv(M, tm)

    cost = pl.CostEstimate(
        flops=2 * M * K * D,
        transcendentals=0,
        bytes_accessed=(M * K + K * D + M * D) * itemsize,
    )

    out = pl.pallas_call(
        _linear_kernel,
        out_shape=jax.ShapeDtypeStruct((M, D), out_dtype),
        grid=(grid_m,),
        in_specs=[
            pl.BlockSpec((tm, K), lambda i: (i, 0)),
            # Constant weight block: reused every grid step -> single buffer.
            pl.BlockSpec((K, D), lambda i: (0, 0), pipeline_mode=pl.Buffered(1)),
        ],
        out_specs=pl.BlockSpec((tm, D), lambda i: (i, 0)),
        compiler_params=pltpu.CompilerParams(
            dimension_semantics=("parallel",),          # M tiles shard across TCs
            vmem_limit_bytes=32 * 1024 * 1024,
        ),
        cost_estimate=cost,
    )(x, wt)

    return jnp.reshape(out, (B, N, D))


def xavier_normal(key, shape, gain):
    # nn.init.xavier_normal_ on a (fan_out, fan_in) Linear weight
    fan_out, fan_in = shape
    std = gain * (2.0 / (fan_in + fan_out)) ** 0.5
    return std * jax.random.normal(key, shape, dtype=jnp.float32)


if __name__ == "__main__":
    key = jax.random.PRNGKey(0)
    k_x, k_w, k_x2 = jax.random.split(key, 3)

    # --- Test 1: small module-consistent shapes, f32, strict check --------------
    # headNumb=4, originDim=32, nodes=8, batch=2
    B, H, N, D = 2, 4, 8, 32
    concat_feature = jax.random.normal(k_x, (B, H, N, D), dtype=jnp.float32)
    weight = xavier_normal(k_w, (D, H * D), gain=1.414)  # nn.Linear(H*D, D).weight

    out = jax.block_until_ready(concat_resnet_transform_v3(concat_feature, weight))
    ref = jnp.reshape(concat_feature, (B, N, -1)) @ weight.T
    assert out.shape == (B, N, D)
    assert out.dtype == concat_feature.dtype            # f32 in -> f32 out
    assert jnp.allclose(out, ref, atol=1e-4, rtol=1e-4)

    # --- Test 2: multi-tile M grid (min_tiles guard -> 8 tiles of 128 rows) -----
    B2, N2 = 2, 512  # M = 1024
    concat_feature2 = jax.random.normal(k_x2, (B2, H, N2, D), dtype=jnp.float32)
    out2 = jax.block_until_ready(concat_resnet_transform_v3(concat_feature2, weight))
    ref2 = jnp.reshape(concat_feature2, (B2, N2, -1)) @ weight.T
    assert out2.shape == (B2, N2, D)
    assert jnp.allclose(out2, ref2, atol=1e-3, rtol=1e-3)

    # --- Test 3: genuinely-bf16 inputs (no wrapper-side cast of x) --------------
    cf_bf16 = concat_feature2.astype(jnp.bfloat16)
    out3 = jax.block_until_ready(concat_resnet_transform_v3(cf_bf16, weight))
    ref3 = jnp.reshape(cf_bf16.astype(jnp.float32), (B2, N2, -1)) @ weight.T
    assert out3.dtype == jnp.bfloat16
    assert jnp.allclose(out3.astype(jnp.float32), ref3, atol=1e-1, rtol=5e-2)

    print("KERNEL_OK")
</pallas_src>

<mosaic_0001>
module attributes {stable_mosaic.version = 11 : i64} {
  func.func @_linear_kernel(%arg0: i32, %arg1: memref<8x128xf32, #tpu.memory_space<vmem>>, %arg2: memref<128x32xf32, #tpu.memory_space<vmem>>, %arg3: memref<8x32xf32, #tpu.memory_space<vmem>>) attributes {dimension_semantics = [#tpu.dimension_semantics<parallel>], iteration_bounds = array<i64: 2>, scalar_prefetch = 0 : i64, scratch_operands = 0 : i64, tpu.core_type = #tpu.core_type<tc>, window_params = [{transform_indices = @transform_0, window_bounds = array<i64: 8, 128>}, {pipeline_mode = #tpu.pipeline_mode<synchronous>, transform_indices = @transform_1, window_bounds = array<i64: 128, 32>}, {transform_indices = @transform_2, window_bounds = array<i64: 8, 32>}]} {
    %c0 = arith.constant 0 : index
    %c0_0 = arith.constant 0 : index
    %0 = vector.load %arg1[%c0, %c0_0] : memref<8x128xf32, #tpu.memory_space<vmem>>, vector<8x128xf32>
    %c0_1 = arith.constant 0 : index
    %c0_2 = arith.constant 0 : index
    %1 = vector.load %arg2[%c0_1, %c0_2] : memref<128x32xf32, #tpu.memory_space<vmem>>, vector<128x32xf32>
    %cst = arith.constant dense<0.000000e+00> : vector<8x32xf32>
    %2 = tpu.matmul %0, %1, %cst {dimension_numbers = #tpu.dot_dimension_numbers<[1], [0], [0], [1], [0, 0, 1, 1], [], []>} : vector<8x128xf32>, vector<128x32xf32>, vector<8x32xf32> -> vector<8x32xf32>
    %c0_3 = arith.constant 0 : index
    %c0_4 = arith.constant 0 : index
    %3 = vector.load %arg3[%c0_3, %c0_4] : memref<8x32xf32, #tpu.memory_space<vmem>>, vector<8x32xf32>
    tpu.vector_store %arg3[%c0_3, %c0_4], %2 {strides = array<i32>} : memref<8x32xf32, #tpu.memory_space<vmem>>, vector<8x32xf32>,
    return
  }
  func.func @transform_0(%arg0: i32) -> (i32, i32) {
    %c0_i32 = arith.constant 0 : i32
    %c0_i32_0 = arith.constant 0 : i32
    return %arg0, %c0_i32 : i32, i32
  }
  func.func @transform_1(%arg0: i32) -> (i32, i32) {
    %c0_i32 = arith.constant 0 : i32
    %c0_i32_0 = arith.constant 0 : i32
    %c0_i32_1 = arith.constant 0 : i32
    return %c0_i32, %c0_i32_0 : i32, i32
  }
  func.func @transform_2(%arg0: i32) -> (i32, i32) {
    %c0_i32 = arith.constant 0 : i32
    %c0_i32_0 = arith.constant 0 : i32
    return %arg0, %c0_i32 : i32, i32
  }
}

</mosaic_0001>

<llo_original>
// kernel: tpu_custom_call.1
$region0: #{tpu_custom_call.1}
  #allocation0 [shape = 'u32[]', space=smem, size = 0x4, offset = 0x4, fixed_abs, tag = 'smem constant byte address 0x4 - core index']
  #allocation1 [shape = 'u32[144,128]{1,0:T(1,128)}', space=vmem, size = 0x12000, scoped, tag = 'internal scratch']
  %s0 = inlined_call_operand.vmem [shape: f32[16,128], index: 0, kind: input, shape index: {}]
  %s1 = inlined_call_operand.vmem [shape: f32[128,32], index: 1, kind: input, shape index: {}]
  %s2 = inlined_call_operand.hbm [shape: f32[16,32], index: 2, kind: output, shape index: {}]
  %s3 = sld [smem:[#allocation0]]
  $region41: #{tpu_custom_call.1} parent=0
    _
  %s5 = ssub.s32 1, %s3
  %s6 = scalar_select 0, %s5, %s3
  $region1: #{tpu_custom_call.1} parent=0
    #allocation2 [shape = 'u8[8192]{0}', space=vmem, size = 0x2000, scoped, tag = 'output window, operand 0']
    #allocation3 [shape = 's32[2]{0}', space=sflag, size = 0x8, scoped, tag = 'scoped memory for tpu_custom_call.1']
    %7 = vsyncpa [#allocation3], 0
    %s8 = scalar_lea.sflag [#allocation3], 1
    %9 = vsyncpa %s8, 0
    loop: start=0, step=1, limit=4
    $region2: #{tpu_custom_call.1} parent=1 // loop_pre_header
      _
    $region3: #{tpu_custom_call.1} parent=1 // loop_header
      %s11 = sphi 0, %s15
      %p12 = scmp.ge.s32.totalorder %s11, 4
      %s21 = sphi 0, %s23
      %s24 = sphi 0, %s21
      %s25 = sphi 0, %s24
      %s41 = sphi 0, %s25
      %s45 = sphi 0, %s45
      %s47 = sphi 0, %s45
      %s48 = sphi 0, %s47
      %s62 = sphi 0, %s48
      %s68 = sphi 0, %s70
      %s71 = sphi 0, %s68
      %s72 = sphi 0, %s71
      %s88 = sphi 0, %s72
    $region4: #{tpu_custom_call.1} parent=1 // loop_header_branch
      %14 = sbr.rel (%p12) target = $region8
    $region5: #{tpu_custom_call.1} parent=1 // loop_body
      %s16 = ssub.s32 %s11, 1
      %s17 = ssub.s32 %s11, 2
      %s18 = sadd.s32 %s11, 1
      %s19 = ssub.s32 %s11, %s18
      %p20 = scmp.eq.s32.totalorder %s19, 0
      %s22 = sadd.s32 %s21, 1
      %s23 = scalar_select %p20, %s21, %s22
      %p26 = pneg %p20
      %p27 = scmp.eq.s32.totalorder %s11, 1
      %p28 = por %p26, %p27
      %p29 = scmp.ne.s32.totalorder %s21, %s24
      %p30 = scmp.eq.s32.totalorder %s11, 0
      %p31 = por %p29, %p30
      %p32 = scmp.ne.s32.totalorder %s21, %s24
      %p33 = scmp.eq.s32.totalorder %s16, 1
      %p34 = por %p32, %p33
      %p35 = scmp.ne.s32.totalorder %s24, %s25
      %p36 = scmp.eq.s32.totalorder %s16, 0
      %p37 = por %p35, %p36
      %p38 = scmp.ne.s32.totalorder %s24, %s25
      %p39 = scmp.eq.s32.totalorder %s17, 1
      %p40 = por %p38, %p39
      %p42 = scmp.ne.s32.totalorder %s25, %s41
      %p43 = scmp.eq.s32.totalorder %s17, 0
      %p44 = por %p42, %p43
      %s46 = sadd.s32 %s45, 1
      %p49 = scmp.eq.s32.totalorder %s11, 1
      %p50 = scmp.ne.s32.totalorder %s45, %s47
      %p51 = scmp.eq.s32.totalorder %s11, 0
      %p52 = por %p50, %p51
      %p53 = scmp.ne.s32.totalorder %s45, %s47
      %p54 = scmp.eq.s32.totalorder %s16, 1
      %p55 = por %p53, %p54
      %p56 = scmp.ne.s32.totalorder %s47, %s48
      %p57 = scmp.eq.s32.totalorder %s16, 0
      %p58 = por %p56, %p57
      %p59 = scmp.ne.s32.totalorder %s47, %s48
      %p60 = scmp.eq.s32.totalorder %s17, 1
      %p61 = por %p59, %p60
      %p63 = scmp.ne.s32.totalorder %s48, %s62
      %p64 = scmp.eq.s32.totalorder %s17, 0
      %p65 = por %p63, %p64
      %s66 = ssub.s32 %s11, %s18
      %p67 = scmp.eq.s32.totalorder %s66, 0
      %s69 = sadd.s32 %s68, 1
      %s70 = scalar_select %p67, %s68, %s69
      %p73 = pneg %p67
      %p74 = scmp.eq.s32.totalorder %s11, 1
      %p75 = por %p73, %p74
      %p76 = scmp.ne.s32.totalorder %s68, %s71
      %p77 = scmp.eq.s32.totalorder %s11, 0
      %p78 = por %p76, %p77
      %p79 = scmp.ne.s32.totalorder %s68, %s71
      %p80 = scmp.eq.s32.totalorder %s16, 1
      %p81 = por %p79, %p80
      %p82 = scmp.ne.s32.totalorder %s71, %s72
      %p83 = scmp.eq.s32.totalorder %s16, 0
      %p84 = por %p82, %p83
      %p85 = scmp.ne.s32.totalorder %s71, %s72
      %p86 = scmp.eq.s32.totalorder %s17, 1
      %p87 = por %p85, %p86
      %p89 = scmp.ne.s32.totalorder %s72, %s88
      %p90 = scmp.eq.s32.totalorder %s17, 0
      %p91 = por %p89, %p90
      %p92 = scmp.le.s32.totalorder 1, %s11
      %p93 = scmp.lt.s32.totalorder %s11, 3
      %p94 = pnand %p92, %p93
      %p95 = pneg %p94
      // Predicated region
      $region9: #{tpu_custom_call.1} parent=5 // pred_check
        _
      $region10: #{tpu_custom_call.1} parent=5 // pred_check_branch
        %97 = sbr.rel (%p94) target = $region12
      $region11: #{tpu_custom_call.1} parent=5 // pred_region
        %s98 = ssub.s32 %s11, 1
        // Predicated region
        $region13: #{tpu_custom_call.1} parent=11 // pred_check
          %p99 = pneg %p58
        $region14: #{tpu_custom_call.1} parent=11 // pred_check_branch
          %101 = sbr.rel (%p99) target = $region16
        $region15: #{tpu_custom_call.1} parent=11 // pred_region
          _
        $region16: #{tpu_custom_call.1} parent=11 // pred_fallthru
          _
      $region12: #{tpu_custom_call.1} parent=5 // pred_fallthru
        _
      %p102 = scmp.lt.s32.totalorder %s11, 2
      // Predicated region
      $region17: #{tpu_custom_call.1} parent=5 // pred_check
        %p103 = pneg %p102
      $region18: #{tpu_custom_call.1} parent=5 // pred_check_branch
        %105 = sbr.rel (%p103) target = $region20
      $region19: #{tpu_custom_call.1} parent=5 // pred_region
        // Predicated region
        $region21: #{tpu_custom_call.1} parent=19 // pred_check
          %p106 = pneg %p31
        $region22: #{tpu_custom_call.1} parent=19 // pred_check_branch
          %108 = sbr.rel (%p106) target = $region24
        $region23: #{tpu_custom_call.1} parent=19 // pred_region
          %p109 = scmp.lt.s32.totalorder %s11, 1
          %s110 = scalar_select %p109, %s11, 1
          %s111 = smul.addr %s110, 8
          %s112 = scalar_lea.vmem %s0, %s111
        $region24: #{tpu_custom_call.1} parent=19 // pred_fallthru
          _
      $region20: #{tpu_custom_call.1} parent=5 // pred_fallthru
        _
      %p113 = scmp.le.s32.totalorder 1, %s11
      %p114 = scmp.lt.s32.totalorder %s11, 3
      %p115 = pnand %p113, %p114
      %p116 = pneg %p115
      // Predicated region
      $region25: #{tpu_custom_call.1} parent=5 // pred_check
        _
      $region26: #{tpu_custom_call.1} parent=5 // pred_check_branch
        %118 = sbr.rel (%p115) target = $region28
      $region27: #{tpu_custom_call.1} parent=5 // pred_region
        %s119 = ssub.s32 %s11, 1
        %p120 = scmp.lt.s32.totalorder %s16, 1
        %s121 = scalar_select %p120, %s16, 1
        %s122 = smul.addr %s121, 8
        %s123 = scalar_lea.vmem %s0, %s122
        %p124 = pneg %p37
        %p125 = pneg %p34
        %p126 = pneg %p58
        %p127 = pneg %p55
        %p128 = pneg %p84
        %p129 = pneg %p81
        %s130 = sand.u32 %s71, 1
        %s131 = scalar_lea.sflag [#allocation3], %s130
        %s132 = sand.u32 %s71, 1
        %s133 = smul.addr %s132, 8
        %s134 = scalar_lea.vmem [#allocation2], %s133
        %p135 = scmp.lt.s32.totalorder %s16, 1
        %s136 = scalar_select %p135, %s16, 1
        %s137 = smul.addr %s136, 8
        %s138 = scalar_lea.vmem %s0, %s137
        %v139 = vld [vmem:[%s138] sm:$0xff]
        %v140 = vld [vmem:[%s1] sm:$0xff]
        %v141 = vld [vmem:[%s1 + $0x8] sm:$0xff]
        %v142 = vld [vmem:[%s1 + $0x10] sm:$0xff]
        %v143 = vld [vmem:[%s1 + $0x18] sm:$0xff]
        %v144 = vld [vmem:[%s1 + $0x20] sm:$0xff]
        %v145 = vld [vmem:[%s1 + $0x28] sm:$0xff]
        %v146 = vld [vmem:[%s1 + $0x30] sm:$0xff]
        %v147 = vld [vmem:[%s1 + $0x38] sm:$0xff]
        %v148 = vld [vmem:[%s1 + $0x40] sm:$0xff]
        %v149 = vld [vmem:[%s1 + $0x48] sm:$0xff]
        %v150 = vld [vmem:[%s1 + $0x50] sm:$0xff]
        %v151 = vld [vmem:[%s1 + $0x58] sm:$0xff]
        %v152 = vld [vmem:[%s1 + $0x60] sm:$0xff]
        %v153 = vld [vmem:[%s1 + $0x68] sm:$0xff]
        %v154 = vld [vmem:[%s1 + $0x70] sm:$0xff]
        %v155 = vld [vmem:[%s1 + $0x78] sm:$0xff]
        %156 = vmatprep.subr.mxu0 0.0
        %157 = vmatpush1.msra.mxu0 %v155
        %158 = vmatprep.subr.mxu0 0.0
        %159 = vmatpush1.msra.mxu0 %v154
        %160 = vmatprep.subr.mxu0 0.0
        %161 = vmatpush1.msra.mxu0 %v153
        %162 = vmatprep.subr.mxu0 0.0
        %163 = vmatpush1.msra.mxu0 %v152
        %164 = vmatprep.subr.mxu0 0.0
        %165 = vmatpush1.msra.mxu0 %v151
        %166 = vmatprep.subr.mxu0 0.0
        %167 = vmatpush1.msra.mxu0 %v150
        %168 = vmatprep.subr.mxu0 0.0
        %169 = vmatpush1.msra.mxu0 %v149
        %170 = vmatprep.subr.mxu0 0.0
        %171 = vmatpush1.msra.mxu0 %v148
        %172 = vmatprep.subr.mxu0 0.0
        %173 = vmatpush1.msra.mxu0 %v147
        %174 = vmatprep.subr.mxu0 0.0
        %175 = vmatpush1.msra.mxu0 %v146
        %176 = vmatprep.subr.mxu0 0.0
        %177 = vmatpush1.msra.mxu0 %v145
        %178 = vmatprep.subr.mxu0 0.0
        %179 = vmatpush1.msra.mxu0 %v144
        %180 = vmatprep.subr.mxu0 0.0
        %181 = vmatpush1.msra.mxu0 %v143
        %182 = vmatprep.subr.mxu0 0.0
        %183 = vmatpush1.msra.mxu0 %v142
        %184 = vmatprep.subr.mxu0 0.0
        %185 = vmatpush1.msra.mxu0 %v141
        %186 = vmatprep.subr.mxu0 0.0
        %187 = vmatpush1.msra.mxu0 %v140
        %188 = vmatprep.subr.mxu0 0.0
        %189 = vmatpush2.msra.mxu0 0.0
        %190 = vmatprep.subr.mxu0 0.0
        %191 = vmatpush2.msra.mxu0 0.0
        %192 = vmatprep.subr.mxu0 0.0
        %193 = vmatpush2.msra.mxu0 0.0
        %194 = vmatprep.subr.mxu0 0.0
        %195 = vmatpush2.msra.mxu0 0.0
        %196 = vmatprep.subr.mxu0 0.0
        %197 = vmatpush2.msra.mxu0 0.0
        %198 = vmatprep.subr.mxu0 0.0
        %199 = vmatpush2.msra.mxu0 0.0
        %200 = vmatprep.subr.mxu0 0.0
        %201 = vmatpush2.msra.mxu0 0.0
        %202 = vmatprep.subr.mxu0 0.0
        %203 = vmatpush2.msra.mxu0 0.0
        %204 = vmatprep.subr.mxu0 0.0
        %205 = vmatpush2.msra.mxu0 0.0
        %206 = vmatprep.subr.mxu0 0.0
        %207 = vmatpush2.msra.mxu0 0.0
        %208 = vmatprep.subr.mxu0 0.0
        %209 = vmatpush2.msra.mxu0 0.0
        %210 = vmatprep.subr.mxu0 0.0
        %211 = vmatpush2.msra.mxu0 0.0
        %212 = vmatprep.subr.mxu0 0.0
        %213 = vmatpush2.msra.mxu0 0.0
        %214 = vmatprep.subr.mxu0 0.0
        %215 = vmatpush2.msra.mxu0 0.0
        %216 = vmatprep.subr.mxu0 0.0
        %217 = vmatpush2.msra.mxu0 0.0
        %218 = vmatprep.subr.mxu0 0.0
        %219 = vmatpush2.msra.mxu0 0.0
        %220 = vmatprep.mubr.f32.mxu0 0.0
        %221 = vmatmul.mubr.f32.gmra.mxu0 %v139
        %v222 = vpop.f32.mrf.mxu0
        %v223 = vadd.f32 0.0, %v222
        %v224 = vpop.f32.mrf.mxu0
        %225 = vdwg.mxu0
        %vm226 = vcmask 261120
        %227 = vst.msk [vmem:[%s134] sm:$0xff] %vm226, %v223
        %s228 = sand.u32 %s71, 1
        %s229 = scalar_lea.sflag [#allocation3], %s228
        %s230 = sand.u32 %s71, 1
        %s231 = smul.addr %s230, 8
        %s232 = scalar_lea.vmem [#allocation2], %s231
        // Predicated region
        $region29: #{tpu_custom_call.1} parent=27 // pred_check
          %p233 = pneg %p81
        $region30: #{tpu_custom_call.1} parent=27 // pred_check_branch
          %235 = sbr.rel (%p233) target = $region32
        $region31: #{tpu_custom_call.1} parent=27 // pred_region
          %s237 = ssub.s32 128, 128
          %238 = vsyncadd %s229, %s237
          %s239 = smul.addr %s16, 128
          %s240 = scalar_lea.hbm %s2, %s239
          %s242 = sshll.u32 %s232, 4
          %s243 = int_to_ptr.vmem [resolvable:$true] %s242
          %245 = dma.vmem_to_hbm [thread:$0]  %s243, 128, %s240, %s229
        $region32: #{tpu_custom_call.1} parent=27 // pred_fallthru
          _
      $region28: #{tpu_custom_call.1} parent=5 // pred_fallthru
        _
      %p246 = scmp.le.s32.totalorder 2, %s11
      // Predicated region
      $region33: #{tpu_custom_call.1} parent=5 // pred_check
        %p247 = pneg %p246
      $region34: #{tpu_custom_call.1} parent=5 // pred_check_branch
        %249 = sbr.rel (%p247) target = $region36
      $region35: #{tpu_custom_call.1} parent=5 // pred_region
        %s250 = ssub.s32 %s11, 2
        // Predicated region
        $region37: #{tpu_custom_call.1} parent=35 // pred_check
          %p251 = pneg %p87
        $region38: #{tpu_custom_call.1} parent=35 // pred_check_branch
          %253 = sbr.rel (%p251) target = $region40
        $region39: #{tpu_custom_call.1} parent=35 // pred_region
          %s254 = sand.u32 %s72, 1
          %s255 = scalar_lea.sflag [#allocation3], %s254
          %s256 = sand.u32 %s72, 1
          %s257 = smul.addr %s256, 8
          %s258 = scalar_lea.vmem [#allocation2], %s257
          %259 = dma.done %s255, 128
        $region40: #{tpu_custom_call.1} parent=35 // pred_fallthru
          _
      $region36: #{tpu_custom_call.1} parent=5 // pred_fallthru
        _
    $region6: #{tpu_custom_call.1} parent=1 // loop_footer
      %s15 = sadd.s32 1, %s11
    $region7: #{tpu_custom_call.1} parent=1 // loop_footer_branch
      %10 = sbr.rel target = $region3
    $region8: #{tpu_custom_call.1} parent=1 // loop_exit
      _
    %260 = vsyncpa [#allocation3], 1
    %s261 = scalar_lea.sflag [#allocation3], 1
    %262 = vsyncpa %s261, 1

</llo_original>
